<compile_context>
chip_gen: v6e
topology: v6e:2x2x1
jax: 0.10.0
libtpu: 0.0.40
codegen_flags: <defaults>
</compile_context>

<pallas_src>
import functools

import jax
import jax.numpy as jnp
from jax import lax
from jax.experimental import pallas as pl
from jax.experimental.pallas import tpu as pltpu


def _round_up(n, m):
    return ((n + m - 1) // m) * m


# --------------------------------------------------------------------------
# Kernel
# --------------------------------------------------------------------------
def _mlp_kernel(x_ref, w1_ref, b1_ref, w2_ref, b2_ref, w5_ref, b5_ref,
                wp_ref, bp_ref, out_ref, *, layber_number):
    # Feature-major compute: batch lives on the LANE axis everywhere.
    x = x_ref[...]                                   # (IN, TILE_M)   bf16

    # hidden1: (UNIT, IN) @ (IN, TILE_M) -> (UNIT, TILE_M), f32 accumulate.
    h = jnp.dot(w1_ref[...], x, preferred_element_type=jnp.float32)
    h = jnp.maximum(h + b1_ref[...], 0.0)            # (UNIT, TILE_M) f32

    # hidden2 repeated layber_number times (same weights each iteration).
    # Loads/broadcasts hoisted out of the repeat loop.
    w2 = w2_ref[...]                                 # (UNIT, UNIT)   bf16
    b2 = b2_ref[...]                                 # (UNIT, 1)      f32

    def h2_step(hc):
        hh = jnp.dot(w2, hc.astype(w2.dtype), preferred_element_type=jnp.float32)
        return jnp.maximum(hh + b2, 0.0)             # dropout == identity (eval)

    if layber_number <= 4:
        for _ in range(layber_number):
            h = h2_step(h)
    else:
        # Bounded loop for large depths; h carried, weights closed over.
        h = lax.fori_loop(0, layber_number, lambda _, hc: h2_step(hc), h,
                          unroll=True)

    # hidden5: (64, UNIT) @ (UNIT, TILE_M) -> (64, TILE_M)
    h = jnp.dot(w5_ref[...], h.astype(w5_ref.dtype),
                preferred_element_type=jnp.float32)
    h = jnp.maximum(h + b5_ref[...], 0.0)            # dropout == identity (eval)

    # predict (64 -> 1): VPU multiply + sublane reduction (no N=1 MXU matmul);
    # result is a lane-dense (1, TILE_M) row.
    out_row = jnp.sum(h * wp_ref[...], axis=0, keepdims=True) + bp_ref[...]
    out_ref[...] = out_row.astype(out_ref.dtype)


# --------------------------------------------------------------------------
# Plain-XLA fallback for tiny batches (same numerics as the kernel path).
# --------------------------------------------------------------------------
def _mlp_xla(x, params, layber_number, compute_dtype):
    w1, b1, w2, b2, w5, b5, wp, bp = params
    f32 = jnp.float32

    def mm(h, w):
        return jnp.dot(h.astype(compute_dtype), w.astype(compute_dtype).T,
                       preferred_element_type=f32)

    h = jnp.maximum(mm(x, w1) + b1, 0.0)
    for _ in range(layber_number):
        h = jnp.maximum(mm(h, w2) + b2, 0.0)          # dropout == identity
    h = jnp.maximum(mm(h, w5) + b5, 0.0)              # dropout == identity
    return (h @ wp.astype(f32).T + bp.astype(f32))[:, 0]


# --------------------------------------------------------------------------
# Wrapper
# --------------------------------------------------------------------------
def _vmem_limit_bytes(tile, in_features, unit):
    bf16, f32, lane = 2, 4, 128
    in_p = _round_up(in_features, 8)
    # double-buffered streamed x tile + double-buffered output tile
    stream = 2 * in_p * tile * bf16 + 2 * 8 * tile * f32
    # resident (double-buffered by BlockSpec) weights / biases, lane-padded
    resident = 2 * (unit * max(in_features, lane) + unit * max(unit, lane)
                    + 64 * max(unit, lane)) * bf16 \
        + 2 * (unit + unit + 64 + 64 + 8) * lane * f32
    # live f32 intermediates inside the body
    live = 4 * unit * tile * f32 + 2 * 64 * tile * f32
    est = stream + resident + live
    # generous headroom, but never ask for more than v7x's 64 MiB per-TC VMEM
    return int(min(64 * 1024 * 1024, max(32 * 1024 * 1024, 2 * est)))


def mlp_regression_forward(x, params, layber_number, *, tile_m=2048,
                           compute_dtype=jnp.bfloat16,
                           min_pallas_batch=512, force_pallas=False):
    """x: [batch, in_features] float32.

    params in PyTorch nn.Linear layout: w*: [out, in], b*: [out].
    Returns [batch] (== predict(...)[:, 0]).
    """
    w1, b1, w2, b2, w5, b5, wp, bp = params
    batch, in_features = x.shape
    unit = w1.shape[0]

    # Tiny batches: a kernel launch is pure dispatch overhead -> plain XLA.
    if batch < min_pallas_batch and not force_pallas:
        return _mlp_xla(x, params, layber_number, compute_dtype)

    # ---- batch tiling (batch lives on the lane axis) ----
    padded_min = _round_up(batch, 128)
    tile = max(128, min(_round_up(tile_m, 128), padded_min))
    # Prefer >= 2 grid steps when there is enough work so v7x's second
    # TensorCore gets a share of the (parallel) grid.
    if tile == padded_min and padded_min >= 256:
        tile = _round_up(padded_min // 2, 128)
    padded = _round_up(batch, tile)
    num_tiles = padded // tile

    # ---- feature-major, bf16 x; f32 accumulation / bias / ReLU math ----
    xt = x.astype(compute_dtype).T                     # (in_features, batch)
    if padded != batch:
        xt = jnp.pad(xt, ((0, 0), (0, padded - batch)))

    w1c = w1.astype(compute_dtype)
    w2c = w2.astype(compute_dtype)
    w5c = w5.astype(compute_dtype)
    b1c = b1.astype(jnp.float32).reshape(unit, 1)
    b2c = b2.astype(jnp.float32).reshape(unit, 1)
    b5c = b5.astype(jnp.float32).reshape(64, 1)
    wpc = wp.astype(jnp.float32).reshape(64, 1)        # used on VPU, keep f32
    bpc = bp.astype(jnp.float32).reshape(1, 1)

    kernel = functools.partial(_mlp_kernel, layber_number=layber_number)

    def full_block(shape):
        return pl.BlockSpec(shape, lambda i, _n=len(shape): (0,) * _n)

    out = pl.pallas_call(
        kernel,
        out_shape=jax.ShapeDtypeStruct((num_tiles, 1, tile), jnp.float32),
        grid=(num_tiles,),
        in_specs=[
            pl.BlockSpec((in_features, tile), lambda i: (0, i)),  # x, feature-major
            full_block((unit, in_features)),                      # w1
            full_block((unit, 1)),                                # b1
            full_block((unit, unit)),                             # w2
            full_block((unit, 1)),                                # b2
            full_block((64, unit)),                               # w5
            full_block((64, 1)),                                  # b5
            full_block((64, 1)),                                  # wp
            full_block((1, 1)),                                   # bp
        ],
        out_specs=pl.BlockSpec((None, 1, tile), lambda i: (i, 0, 0)),
        compiler_params=pltpu.CompilerParams(
            dimension_semantics=("parallel",),
            vmem_limit_bytes=_vmem_limit_bytes(tile, in_features, unit)),
    )(xt, w1c, b1c, w2c, b2c, w5c, b5c, wpc, bpc)

    # (num_tiles, 1, tile) -> (batch,)   (glue reshape/slice outside kernel)
    return out.reshape(-1)[:batch]


# --------------------------------------------------------------------------
# Demo / self-check
# --------------------------------------------------------------------------
def _init_linear(key, fan_in, fan_out):
    """nn.Linear-style init, PyTorch layout: w [out, in], b [out]."""
    kw, kb = jax.random.split(key)
    bound = 1.0 / (fan_in ** 0.5)
    w = jax.random.uniform(kw, (fan_out, fan_in), jnp.float32, -bound, bound)
    b = jax.random.uniform(kb, (fan_out,), jnp.float32, -bound, bound)
    return w, b


if __name__ == "__main__":
    # params dict from the PyTorch module
    layber_number = 2
    unit = 32
    in_features = 16          # data.shape[-1] - 1  (i.e. data has 17 columns)
    batch = 640               # exercises padding (640 -> 768) and a 2-step grid
    small_batch = 8           # exercises the plain-XLA tiny-batch path

    key = jax.random.PRNGKey(0)
    k_x, k1, k2, k5, kp = jax.random.split(key, 5)

    x = jax.random.normal(k_x, (batch, in_features), jnp.float32)

    w1, b1 = _init_linear(k1, in_features, unit)   # hidden1
    w2, b2 = _init_linear(k2, unit, unit)          # hidden2 (reused each iter)
    w5, b5 = _init_linear(k5, unit, 64)            # hidden5
    wp, bp = _init_linear(kp, 64, 1)               # predict
    # TODO(synk): hidden3 (128 -> 256) exists in __init__ but is never used in
    # forward, so it is intentionally omitted.

    params = (w1, b1, w2, b2, w5, b5, wp, bp)

    # Pure-JAX reference with the same bf16-input / f32-accumulate numerics.
    def ref(xx):
        f32 = jnp.float32
        xb = xx.astype(jnp.bfloat16).astype(f32)
        w1f = w1.astype(jnp.bfloat16).astype(f32)
        w2f = w2.astype(jnp.bfloat16).astype(f32)
        w5f = w5.astype(jnp.bfloat16).astype(f32)
        h = jnp.maximum(xb @ w1f.T + b1, 0.0)
        for _ in range(layber_number):
            hb = h.astype(jnp.bfloat16).astype(f32)
            h = jnp.maximum(hb @ w2f.T + b2, 0.0)
        hb = h.astype(jnp.bfloat16).astype(f32)
        h = jnp.maximum(hb @ w5f.T + b5, 0.0)
        return (h @ wp.T + bp)[:, 0]

    # Pallas path (batch >= min_pallas_batch).
    out = mlp_regression_forward(x, params, layber_number)
    out = jax.block_until_ready(out)
    expected = ref(x)
    assert out.shape == (batch,)
    assert jnp.allclose(out, expected, atol=5e-3, rtol=5e-3), (out, expected)

    # Tiny-batch fallback path.
    xs = jax.random.normal(jax.random.PRNGKey(1), (small_batch, in_features),
                           jnp.float32)
    out_small = jax.block_until_ready(
        mlp_regression_forward(xs, params, layber_number))
    assert out_small.shape == (small_batch,)
    assert jnp.allclose(out_small, ref(xs), atol=5e-3, rtol=5e-3)

    print("KERNEL_OK")
</pallas_src>

<mosaic_0001>
module attributes {stable_mosaic.version = 11 : i64} {
  func.func @_mlp_kernel(%arg0: i32, %arg1: memref<16x384xbf16, #tpu.memory_space<vmem>>, %arg2: memref<32x16xbf16, #tpu.memory_space<vmem>>, %arg3: memref<32x1xf32, #tpu.memory_space<vmem>>, %arg4: memref<32x32xbf16, #tpu.memory_space<vmem>>, %arg5: memref<32x1xf32, #tpu.memory_space<vmem>>, %arg6: memref<64x32xbf16, #tpu.memory_space<vmem>>, %arg7: memref<64x1xf32, #tpu.memory_space<vmem>>, %arg8: memref<64x1xf32, #tpu.memory_space<vmem>>, %arg9: memref<1x1xf32, #tpu.memory_space<vmem>>, %arg10: memref<1x1x384xf32, #tpu.memory_space<vmem>>) attributes {dimension_semantics = [#tpu.dimension_semantics<parallel>], iteration_bounds = array<i64: 2>, scalar_prefetch = 0 : i64, scratch_operands = 0 : i64, tpu.core_type = #tpu.core_type<tc>, window_params = [{transform_indices = @transform_0, window_bounds = array<i64: 16, 384>}, {pipeline_mode = #tpu.pipeline_mode<synchronous>, transform_indices = @transform_1, window_bounds = array<i64: 32, 16>}, {pipeline_mode = #tpu.pipeline_mode<synchronous>, transform_indices = @transform_2, window_bounds = array<i64: 32, 1>}, {pipeline_mode = #tpu.pipeline_mode<synchronous>, transform_indices = @transform_3, window_bounds = array<i64: 32, 32>}, {pipeline_mode = #tpu.pipeline_mode<synchronous>, transform_indices = @transform_4, window_bounds = array<i64: 32, 1>}, {pipeline_mode = #tpu.pipeline_mode<synchronous>, transform_indices = @transform_5, window_bounds = array<i64: 64, 32>}, {pipeline_mode = #tpu.pipeline_mode<synchronous>, transform_indices = @transform_6, window_bounds = array<i64: 64, 1>}, {pipeline_mode = #tpu.pipeline_mode<synchronous>, transform_indices = @transform_7, window_bounds = array<i64: 64, 1>}, {pipeline_mode = #tpu.pipeline_mode<synchronous>, transform_indices = @transform_8, window_bounds = array<i64: 1, 1>}, {transform_indices = @transform_9, window_bounds = array<i64: 1, 1, 384>}]} {
    %c0 = arith.constant 0 : index
    %c0_0 = arith.constant 0 : index
    %0 = vector.load %arg1[%c0, %c0_0] : memref<16x384xbf16, #tpu.memory_space<vmem>>, vector<16x384xbf16>
    %c0_1 = arith.constant 0 : index
    %c0_2 = arith.constant 0 : index
    %1 = vector.load %arg2[%c0_1, %c0_2] : memref<32x16xbf16, #tpu.memory_space<vmem>>, vector<32x16xbf16>
    %cst = arith.constant dense<0.000000e+00> : vector<32x384xf32>
    %2 = tpu.matmul %1, %0, %cst {dimension_numbers = #tpu.dot_dimension_numbers<[1], [0], [0], [1], [0, 0, 1, 1], [], []>} : vector<32x16xbf16>, vector<16x384xbf16>, vector<32x384xf32> -> vector<32x384xf32>
    %c0_3 = arith.constant 0 : index
    %c0_4 = arith.constant 0 : index
    %3 = vector.load %arg3[%c0_3, %c0_4] : memref<32x1xf32, #tpu.memory_space<vmem>>, vector<32x1xf32>
    %4 = vector.broadcast %3 : vector<32x1xf32> to vector<32x384xf32>
    %5 = arith.addf %2, %4 : vector<32x384xf32>
    %cst_5 = arith.constant 0.000000e+00 : f32
    %6 = vector.broadcast %cst_5 : f32 to vector<32x384xf32>
    %7 = arith.maximumf %5, %6 : vector<32x384xf32>
    %c0_6 = arith.constant 0 : index
    %c0_7 = arith.constant 0 : index
    %8 = vector.load %arg4[%c0_6, %c0_7] : memref<32x32xbf16, #tpu.memory_space<vmem>>, vector<32x32xbf16>
    %c0_8 = arith.constant 0 : index
    %c0_9 = arith.constant 0 : index
    %9 = vector.load %arg5[%c0_8, %c0_9] : memref<32x1xf32, #tpu.memory_space<vmem>>, vector<32x1xf32>
    %10 = arith.truncf %7 : vector<32x384xf32> to vector<32x384xbf16>
    %cst_10 = arith.constant dense<0.000000e+00> : vector<32x384xf32>
    %11 = tpu.matmul %8, %10, %cst_10 {dimension_numbers = #tpu.dot_dimension_numbers<[1], [0], [0], [1], [0, 0, 1, 1], [], []>} : vector<32x32xbf16>, vector<32x384xbf16>, vector<32x384xf32> -> vector<32x384xf32>
    %12 = vector.broadcast %9 : vector<32x1xf32> to vector<32x384xf32>
    %13 = arith.addf %11, %12 : vector<32x384xf32>
    %cst_11 = arith.constant 0.000000e+00 : f32
    %14 = vector.broadcast %cst_11 : f32 to vector<32x384xf32>
    %15 = arith.maximumf %13, %14 : vector<32x384xf32>
    %16 = arith.truncf %15 : vector<32x384xf32> to vector<32x384xbf16>
    %cst_12 = arith.constant dense<0.000000e+00> : vector<32x384xf32>
    %17 = tpu.matmul %8, %16, %cst_12 {dimension_numbers = #tpu.dot_dimension_numbers<[1], [0], [0], [1], [0, 0, 1, 1], [], []>} : vector<32x32xbf16>, vector<32x384xbf16>, vector<32x384xf32> -> vector<32x384xf32>
    %18 = vector.broadcast %9 : vector<32x1xf32> to vector<32x384xf32>
    %19 = arith.addf %17, %18 : vector<32x384xf32>
    %cst_13 = arith.constant 0.000000e+00 : f32
    %20 = vector.broadcast %cst_13 : f32 to vector<32x384xf32>
    %21 = arith.maximumf %19, %20 : vector<32x384xf32>
    %c0_14 = arith.constant 0 : index
    %c0_15 = arith.constant 0 : index
    %22 = vector.load %arg6[%c0_14, %c0_15] : memref<64x32xbf16, #tpu.memory_space<vmem>>, vector<64x32xbf16>
    %23 = arith.truncf %21 : vector<32x384xf32> to vector<32x384xbf16>
    %cst_16 = arith.constant dense<0.000000e+00> : vector<64x384xf32>
    %24 = tpu.matmul %22, %23, %cst_16 {dimension_numbers = #tpu.dot_dimension_numbers<[1], [0], [0], [1], [0, 0, 1, 1], [], []>} : vector<64x32xbf16>, vector<32x384xbf16>, vector<64x384xf32> -> vector<64x384xf32>
    %c0_17 = arith.constant 0 : index
    %c0_18 = arith.constant 0 : index
    %25 = vector.load %arg7[%c0_17, %c0_18] : memref<64x1xf32, #tpu.memory_space<vmem>>, vector<64x1xf32>
    %26 = vector.broadcast %25 : vector<64x1xf32> to vector<64x384xf32>
    %27 = arith.addf %24, %26 : vector<64x384xf32>
    %cst_19 = arith.constant 0.000000e+00 : f32
    %28 = vector.broadcast %cst_19 : f32 to vector<64x384xf32>
    %29 = arith.maximumf %27, %28 : vector<64x384xf32>
    %c0_20 = arith.constant 0 : index
    %c0_21 = arith.constant 0 : index
    %30 = vector.load %arg8[%c0_20, %c0_21] : memref<64x1xf32, #tpu.memory_space<vmem>>, vector<64x1xf32>
    %31 = vector.broadcast %30 : vector<64x1xf32> to vector<64x384xf32>
    %32 = arith.mulf %29, %31 : vector<64x384xf32>
    %cst_22 = arith.constant dense<0.000000e+00> : vector<384xf32>
    %33 = vector.multi_reduction <add>, %32, %cst_22 [0] : vector<64x384xf32> to vector<384xf32>
    %34 = vector.shape_cast %33 : vector<384xf32> to vector<1x384xf32>
    %c0_23 = arith.constant 0 : index
    %c0_24 = arith.constant 0 : index
    %35 = vector.load %arg9[%c0_23, %c0_24] : memref<1x1xf32, #tpu.memory_space<vmem>>, vector<1x1xf32>
    %36 = vector.broadcast %35 : vector<1x1xf32> to vector<1x384xf32>
    %37 = arith.addf %34, %36 : vector<1x384xf32>
    %c0_25 = arith.constant 0 : index
    %c0_26 = arith.constant 0 : index
    %c0_27 = arith.constant 0 : index
    %38 = vector.load %arg10[%c0_25, %c0_26, %c0_27] : memref<1x1x384xf32, #tpu.memory_space<vmem>>, vector<1x1x384xf32>
    %39 = vector.shape_cast %38 : vector<1x1x384xf32> to vector<1x384xf32>
    %40 = vector.shape_cast %37 : vector<1x384xf32> to vector<1x1x384xf32>
    tpu.vector_store %arg10[%c0_25, %c0_26, %c0_27], %40 {strides = array<i32>} : memref<1x1x384xf32, #tpu.memory_space<vmem>>, vector<1x1x384xf32>,
    return
  }
  func.func @transform_0(%arg0: i32) -> (i32, i32) {
    %c0_i32 = arith.constant 0 : i32
    %c0_i32_0 = arith.constant 0 : i32
    return %c0_i32, %arg0 : i32, i32
  }
  func.func @transform_1(%arg0: i32) -> (i32, i32) {
    %c0_i32 = arith.constant 0 : i32
    %c0_i32_0 = arith.constant 0 : i32
    %c0_i32_1 = arith.constant 0 : i32
    return %c0_i32, %c0_i32_0 : i32, i32
  }
  func.func @transform_2(%arg0: i32) -> (i32, i32) {
    %c0_i32 = arith.constant 0 : i32
    %c0_i32_0 = arith.constant 0 : i32
    %c0_i32_1 = arith.constant 0 : i32
    return %c0_i32, %c0_i32_0 : i32, i32
  }
  func.func @transform_3(%arg0: i32) -> (i32, i32) {
    %c0_i32 = arith.constant 0 : i32
    %c0_i32_0 = arith.constant 0 : i32
    %c0_i32_1 = arith.constant 0 : i32
    return %c0_i32, %c0_i32_0 : i32, i32
  }
  func.func @transform_4(%arg0: i32) -> (i32, i32) {
    %c0_i32 = arith.constant 0 : i32
    %c0_i32_0 = arith.constant 0 : i32
    %c0_i32_1 = arith.constant 0 : i32
    return %c0_i32, %c0_i32_0 : i32, i32
  }
  func.func @transform_5(%arg0: i32) -> (i32, i32) {
    %c0_i32 = arith.constant 0 : i32
    %c0_i32_0 = arith.constant 0 : i32
    %c0_i32_1 = arith.constant 0 : i32
    return %c0_i32, %c0_i32_0 : i32, i32
  }
  func.func @transform_6(%arg0: i32) -> (i32, i32) {
    %c0_i32 = arith.constant 0 : i32
    %c0_i32_0 = arith.constant 0 : i32
    %c0_i32_1 = arith.constant 0 : i32
    return %c0_i32, %c0_i32_0 : i32, i32
  }
  func.func @transform_7(%arg0: i32) -> (i32, i32) {
    %c0_i32 = arith.constant 0 : i32
    %c0_i32_0 = arith.constant 0 : i32
    %c0_i32_1 = arith.constant 0 : i32
    return %c0_i32, %c0_i32_0 : i32, i32
  }
  func.func @transform_8(%arg0: i32) -> (i32, i32) {
    %c0_i32 = arith.constant 0 : i32
    %c0_i32_0 = arith.constant 0 : i32
    %c0_i32_1 = arith.constant 0 : i32
    return %c0_i32, %c0_i32_0 : i32, i32
  }
  func.func @transform_9(%arg0: i32) -> (i32, i32, i32) {
    %c0_i32 = arith.constant 0 : i32
    %c0_i32_0 = arith.constant 0 : i32
    %c0_i32_1 = arith.constant 0 : i32
    return %arg0, %c0_i32, %c0_i32_0 : i32, i32, i32
  }
}

</mosaic_0001>

<llo_original>
// kernel: tpu_custom_call.1
$region0: #{tpu_custom_call.1}
  #allocation0 [shape = 'u32[]', space=smem, size = 0x4, offset = 0x4, fixed_abs, tag = 'smem constant byte address 0x4 - core index']
  #allocation1 [shape = 'u32[144,128]{1,0:T(1,128)}', space=vmem, size = 0x12000, scoped, tag = 'internal scratch']
  #allocation2 [shape = 'f32[1,1]{1,0:T(1,128)S(1)}', space=vmem, size = 0x200, scoped, tag = 'scoped memory for tpu_custom_call.1']
  %s0 = inlined_call_operand.vmem [shape: bf16[16,768], index: 0, kind: input, shape index: {}]
  %s1 = inlined_call_operand.vmem [shape: bf16[32,16], index: 1, kind: input, shape index: {}]
  %s2 = inlined_call_operand.vmem [shape: f32[32,1], index: 2, kind: input, shape index: {}]
  %s3 = inlined_call_operand.vmem [shape: bf16[32,32], index: 3, kind: input, shape index: {}]
  %s4 = inlined_call_operand.vmem [shape: f32[32,1], index: 4, kind: input, shape index: {}]
  %s5 = inlined_call_operand.vmem [shape: bf16[64,32], index: 5, kind: input, shape index: {}]
  %s6 = inlined_call_operand.vmem [shape: f32[64,1], index: 6, kind: input, shape index: {}]
  %s7 = inlined_call_operand.vmem [shape: f32[64,1], index: 7, kind: input, shape index: {}]
  %s8 = inlined_call_operand.<no memory space> [shape: f32[1,1], index: 8, kind: input, shape index: {}]
  %s9 = inlined_call_operand.hbm [shape: f32[2,1,384], index: 9, kind: output, shape index: {}]
  %s10 = sld [smem:[#allocation0]]
  $region95: #{tpu_custom_call.1} parent=0
    _
  %s12 = ssub.s32 1, %s10
  %s13 = scalar_select 0, %s12, %s10
  %v14 = vstv %s8
  %15 = vst [vmem:[#allocation2] sm:$0x1] %v14
  $region1: #{tpu_custom_call.1} parent=0
    #allocation3 [shape = 'u8[24576]{0}', space=vmem, size = 0x6000, scoped, tag = 'input window, operand 0']
    #allocation4 [shape = 'u8[3072]{0}', space=vmem, size = 0xc00, scoped, tag = 'output window, operand 0']
    #allocation5 [shape = 's32[2]{0}', space=sflag, size = 0x8, scoped, tag = 'scoped memory for tpu_custom_call.1']
    %16 = vsyncpa [#allocation5], 0
    %s17 = scalar_lea.sflag [#allocation5], 1
    %18 = vsyncpa %s17, 0
    loop: start=0, step=1, limit=4
    $region2: #{tpu_custom_call.1} parent=1 // loop_pre_header
      _
    $region3: #{tpu_custom_call.1} parent=1 // loop_header
      %s20 = sphi 0, %s24
      %p21 = scmp.ge.s32.totalorder %s20, 4
      %s30 = sphi 0, %s32
      %s33 = sphi 0, %s30
      %s34 = sphi 0, %s33
      %s50 = sphi 0, %s34
      %s54 = sphi 0, %s54
      %s56 = sphi 0, %s54
      %s57 = sphi 0, %s56
      %s71 = sphi 0, %s57
      %s75 = sphi 0, %s75
      %s77 = sphi 0, %s75
      %s78 = sphi 0, %s77
      %s92 = sphi 0, %s78
      %s96 = sphi 0, %s96
      %s98 = sphi 0, %s96
      %s99 = sphi 0, %s98
      %s113 = sphi 0, %s99
      %s117 = sphi 0, %s117
      %s119 = sphi 0, %s117
      %s120 = sphi 0, %s119
      %s134 = sphi 0, %s120
      %s138 = sphi 0, %s138
      %s140 = sphi 0, %s138
      %s141 = sphi 0, %s140
      %s155 = sphi 0, %s141
      %s159 = sphi 0, %s159
      %s161 = sphi 0, %s159
      %s162 = sphi 0, %s161
      %s176 = sphi 0, %s162
      %s180 = sphi 0, %s180
      %s182 = sphi 0, %s180
      %s183 = sphi 0, %s182
      %s197 = sphi 0, %s183
      %s201 = sphi 0, %s201
      %s203 = sphi 0, %s201
      %s204 = sphi 0, %s203
      %s218 = sphi 0, %s204
      %s224 = sphi 0, %s226
      %s227 = sphi 0, %s224
      %s228 = sphi 0, %s227
      %s244 = sphi 0, %s228
    $region4: #{tpu_custom_call.1} parent=1 // loop_header_branch
      %23 = sbr.rel (%p21) target = $region8
    $region5: #{tpu_custom_call.1} parent=1 // loop_body
      %s25 = ssub.s32 %s20, 1
      %s26 = ssub.s32 %s20, 2
      %s27 = sadd.s32 %s20, 1
      %s28 = ssub.s32 %s20, %s27
      %p29 = scmp.eq.s32.totalorder %s28, 0
      %s31 = sadd.s32 %s30, 1
      %s32 = scalar_select %p29, %s30, %s31
      %p35 = pneg %p29
      %p36 = scmp.eq.s32.totalorder %s20, 1
      %p37 = por %p35, %p36
      %p38 = scmp.ne.s32.totalorder %s30, %s33
      %p39 = scmp.eq.s32.totalorder %s20, 0
      %p40 = por %p38, %p39
      %p41 = scmp.ne.s32.totalorder %s30, %s33
      %p42 = scmp.eq.s32.totalorder %s25, 1
      %p43 = por %p41, %p42
      %p44 = scmp.ne.s32.totalorder %s33, %s34
      %p45 = scmp.eq.s32.totalorder %s25, 0
      %p46 = por %p44, %p45
      %p47 = scmp.ne.s32.totalorder %s33, %s34
      %p48 = scmp.eq.s32.totalorder %s26, 1
      %p49 = por %p47, %p48
      %p51 = scmp.ne.s32.totalorder %s34, %s50
      %p52 = scmp.eq.s32.totalorder %s26, 0
      %p53 = por %p51, %p52
      %s55 = sadd.s32 %s54, 1
      %p58 = scmp.eq.s32.totalorder %s20, 1
      %p59 = scmp.ne.s32.totalorder %s54, %s56
      %p60 = scmp.eq.s32.totalorder %s20, 0
      %p61 = por %p59, %p60
      %p62 = scmp.ne.s32.totalorder %s54, %s56
      %p63 = scmp.eq.s32.totalorder %s25, 1
      %p64 = por %p62, %p63
      %p65 = scmp.ne.s32.totalorder %s56, %s57
      %p66 = scmp.eq.s32.totalorder %s25, 0
      %p67 = por %p65, %p66
      %p68 = scmp.ne.s32.totalorder %s56, %s57
      %p69 = scmp.eq.s32.totalorder %s26, 1
      %p70 = por %p68, %p69
      %p72 = scmp.ne.s32.totalorder %s57, %s71
      %p73 = scmp.eq.s32.totalorder %s26, 0
      %p74 = por %p72, %p73
      %s76 = sadd.s32 %s75, 1
      %p79 = scmp.eq.s32.totalorder %s20, 1
      %p80 = scmp.ne.s32.totalorder %s75, %s77
      %p81 = scmp.eq.s32.totalorder %s20, 0
      %p82 = por %p80, %p81
      %p83 = scmp.ne.s32.totalorder %s75, %s77
      %p84 = scmp.eq.s32.totalorder %s25, 1
      %p85 = por %p83, %p84
      %p86 = scmp.ne.s32.totalorder %s77, %s78
      %p87 = scmp.eq.s32.totalorder %s25, 0
      %p88 = por %p86, %p87
      %p89 = scmp.ne.s32.totalorder %s77, %s78
      %p90 = scmp.eq.s32.totalorder %s26, 1
      %p91 = por %p89, %p90
      %p93 = scmp.ne.s32.totalorder %s78, %s92
      %p94 = scmp.eq.s32.totalorder %s26, 0
      %p95 = por %p93, %p94
      %s97 = sadd.s32 %s96, 1
      %p100 = scmp.eq.s32.totalorder %s20, 1
      %p101 = scmp.ne.s32.totalorder %s96, %s98
      %p102 = scmp.eq.s32.totalorder %s20, 0
      %p103 = por %p101, %p102
      %p104 = scmp.ne.s32.totalorder %s96, %s98
      %p105 = scmp.eq.s32.totalorder %s25, 1
      %p106 = por %p104, %p105
      %p107 = scmp.ne.s32.totalorder %s98, %s99
      %p108 = scmp.eq.s32.totalorder %s25, 0
      %p109 = por %p107, %p108
      %p110 = scmp.ne.s32.totalorder %s98, %s99
      %p111 = scmp.eq.s32.totalorder %s26, 1
      %p112 = por %p110, %p111
      %p114 = scmp.ne.s32.totalorder %s99, %s113
      %p115 = scmp.eq.s32.totalorder %s26, 0
      %p116 = por %p114, %p115
      %s118 = sadd.s32 %s117, 1
      %p121 = scmp.eq.s32.totalorder %s20, 1
      %p122 = scmp.ne.s32.totalorder %s117, %s119
      %p123 = scmp.eq.s32.totalorder %s20, 0
      %p124 = por %p122, %p123
      %p125 = scmp.ne.s32.totalorder %s117, %s119
      %p126 = scmp.eq.s32.totalorder %s25, 1
      %p127 = por %p125, %p126
      %p128 = scmp.ne.s32.totalorder %s119, %s120
      %p129 = scmp.eq.s32.totalorder %s25, 0
      %p130 = por %p128, %p129
      %p131 = scmp.ne.s32.totalorder %s119, %s120
      %p132 = scmp.eq.s32.totalorder %s26, 1
      %p133 = por %p131, %p132
      %p135 = scmp.ne.s32.totalorder %s120, %s134
      %p136 = scmp.eq.s32.totalorder %s26, 0
      %p137 = por %p135, %p136
      %s139 = sadd.s32 %s138, 1
      %p142 = scmp.eq.s32.totalorder %s20, 1
      %p143 = scmp.ne.s32.totalorder %s138, %s140
      %p144 = scmp.eq.s32.totalorder %s20, 0
      %p145 = por %p143, %p144
      %p146 = scmp.ne.s32.totalorder %s138, %s140
      %p147 = scmp.eq.s32.totalorder %s25, 1
      %p148 = por %p146, %p147
      %p149 = scmp.ne.s32.totalorder %s140, %s141
      %p150 = scmp.eq.s32.totalorder %s25, 0
      %p151 = por %p149, %p150
      %p152 = scmp.ne.s32.totalorder %s140, %s141
      %p153 = scmp.eq.s32.totalorder %s26, 1
      %p154 = por %p152, %p153
      %p156 = scmp.ne.s32.totalorder %s141, %s155
      %p157 = scmp.eq.s32.totalorder %s26, 0
      %p158 = por %p156, %p157
      %s160 = sadd.s32 %s159, 1
      %p163 = scmp.eq.s32.totalorder %s20, 1
      %p164 = scmp.ne.s32.totalorder %s159, %s161
      %p165 = scmp.eq.s32.totalorder %s20, 0
      %p166 = por %p164, %p165
      %p167 = scmp.ne.s32.totalorder %s159, %s161
      %p168 = scmp.eq.s32.totalorder %s25, 1
      %p169 = por %p167, %p168
      %p170 = scmp.ne.s32.totalorder %s161, %s162
      %p171 = scmp.eq.s32.totalorder %s25, 0
      %p172 = por %p170, %p171
      %p173 = scmp.ne.s32.totalorder %s161, %s162
      %p174 = scmp.eq.s32.totalorder %s26, 1
      %p175 = por %p173, %p174
      %p177 = scmp.ne.s32.totalorder %s162, %s176
      %p178 = scmp.eq.s32.totalorder %s26, 0
      %p179 = por %p177, %p178
      %s181 = sadd.s32 %s180, 1
      %p184 = scmp.eq.s32.totalorder %s20, 1
      %p185 = scmp.ne.s32.totalorder %s180, %s182
      %p186 = scmp.eq.s32.totalorder %s20, 0
      %p187 = por %p185, %p186
      %p188 = scmp.ne.s32.totalorder %s180, %s182
      %p189 = scmp.eq.s32.totalorder %s25, 1
      %p190 = por %p188, %p189
      %p191 = scmp.ne.s32.totalorder %s182, %s183
      %p192 = scmp.eq.s32.totalorder %s25, 0
      %p193 = por %p191, %p192
      %p194 = scmp.ne.s32.totalorder %s182, %s183
      %p195 = scmp.eq.s32.totalorder %s26, 1
      %p196 = por %p194, %p195
      %p198 = scmp.ne.s32.totalorder %s183, %s197
      %p199 = scmp.eq.s32.totalorder %s26, 0
      %p200 = por %p198, %p199
      %s202 = sadd.s32 %s201, 1
      %p205 = scmp.eq.s32.totalorder %s20, 1
      %p206 = scmp.ne.s32.totalorder %s201, %s203
      %p207 = scmp.eq.s32.totalorder %s20, 0
      %p208 = por %p206, %p207
      %p209 = scmp.ne.s32.totalorder %s201, %s203
      %p210 = scmp.eq.s32.totalorder %s25, 1
      %p211 = por %p209, %p210
      %p212 = scmp.ne.s32.totalorder %s203, %s204
      %p213 = scmp.eq.s32.totalorder %s25, 0
      %p214 = por %p212, %p213
      %p215 = scmp.ne.s32.totalorder %s203, %s204
      %p216 = scmp.eq.s32.totalorder %s26, 1
      %p217 = por %p215, %p216
      %p219 = scmp.ne.s32.totalorder %s204, %s218
      %p220 = scmp.eq.s32.totalorder %s26, 0
      %p221 = por %p219, %p220
      %s222 = ssub.s32 %s20, %s27
      %p223 = scmp.eq.s32.totalorder %s222, 0
      %s225 = sadd.s32 %s224, 1
      %s226 = scalar_select %p223, %s224, %s225
      %p229 = pneg %p223
      %p230 = scmp.eq.s32.totalorder %s20, 1
      %p231 = por %p229, %p230
      %p232 = scmp.ne.s32.totalorder %s224, %s227
      %p233 = scmp.eq.s32.totalorder %s20, 0
      %p234 = por %p232, %p233
      %p235 = scmp.ne.s32.totalorder %s224, %s227
      %p236 = scmp.eq.s32.totalorder %s25, 1
      %p237 = por %p235, %p236
      %p238 = scmp.ne.s32.totalorder %s227, %s228
      %p239 = scmp.eq.s32.totalorder %s25, 0
      %p240 = por %p238, %p239
      %p241 = scmp.ne.s32.totalorder %s227, %s228
      %p242 = scmp.eq.s32.totalorder %s26, 1
      %p243 = por %p241, %p242
      %p245 = scmp.ne.s32.totalorder %s228, %s244
      %p246 = scmp.eq.s32.totalorder %s26, 0
      %p247 = por %p245, %p246
      %p248 = scmp.le.s32.totalorder 1, %s20
      %p249 = scmp.lt.s32.totalorder %s20, 3
      %p250 = pnand %p248, %p249
      %p251 = pneg %p250
      // Predicated region
      $region9: #{tpu_custom_call.1} parent=5 // pred_check
        _
      $region10: #{tpu_custom_call.1} parent=5 // pred_check_branch
        %253 = sbr.rel (%p250) target = $region12
      $region11: #{tpu_custom_call.1} parent=5 // pred_region
        %s254 = ssub.s32 %s20, 1
        // Predicated region
        $region13: #{tpu_custom_call.1} parent=11 // pred_check
          %p255 = pneg %p67
        $region14: #{tpu_custom_call.1} parent=11 // pred_check_branch
          %257 = sbr.rel (%p255) target = $region16
        $region15: #{tpu_custom_call.1} parent=11 // pred_region
          _
        $region16: #{tpu_custom_call.1} parent=11 // pred_fallthru
          _
        // Predicated region
        $region17: #{tpu_custom_call.1} parent=11 // pred_check
          %p258 = pneg %p88
        $region18: #{tpu_custom_call.1} parent=11 // pred_check_branch
          %260 = sbr.rel (%p258) target = $region20
        $region19: #{tpu_custom_call.1} parent=11 // pred_region
          _
        $region20: #{tpu_custom_call.1} parent=11 // pred_fallthru
          _
        // Predicated region
        $region21: #{tpu_custom_call.1} parent=11 // pred_check
          %p261 = pneg %p109
        $region22: #{tpu_custom_call.1} parent=11 // pred_check_branch
          %263 = sbr.rel (%p261) target = $region24
        $region23: #{tpu_custom_call.1} parent=11 // pred_region
          _
        $region24: #{tpu_custom_call.1} parent=11 // pred_fallthru
          _
        // Predicated region
        $region25: #{tpu_custom_call.1} parent=11 // pred_check
          %p264 = pneg %p130
        $region26: #{tpu_custom_call.1} parent=11 // pred_check_branch
          %266 = sbr.rel (%p264) target = $region28
        $region27: #{tpu_custom_call.1} parent=11 // pred_region
          _
        $region28: #{tpu_custom_call.1} parent=11 // pred_fallthru
          _
        // Predicated region
        $region29: #{tpu_custom_call.1} parent=11 // pred_check
          %p267 = pneg %p151
        $region30: #{tpu_custom_call.1} parent=11 // pred_check_branch
          %269 = sbr.rel (%p267) target = $region32
        $region31: #{tpu_custom_call.1} parent=11 // pred_region
          _
        $region32: #{tpu_custom_call.1} parent=11 // pred_fallthru
          _
        // Predicated region
        $region33: #{tpu_custom_call.1} parent=11 // pred_check
          %p270 = pneg %p172
        $region34: #{tpu_custom_call.1} parent=11 // pred_check_branch
          %272 = sbr.rel (%p270) target = $region36
        $region35: #{tpu_custom_call.1} parent=11 // pred_region
          _
        $region36: #{tpu_custom_call.1} parent=11 // pred_fallthru
          _
        // Predicated region
        $region37: #{tpu_custom_call.1} parent=11 // pred_check
          %p273 = pneg %p193
        $region38: #{tpu_custom_call.1} parent=11 // pred_check_branch
          %275 = sbr.rel (%p273) target = $region40
        $region39: #{tpu_custom_call.1} parent=11 // pred_region
          _
        $region40: #{tpu_custom_call.1} parent=11 // pred_fallthru
          _
        // Predicated region
        $region41: #{tpu_custom_call.1} parent=11 // pred_check
          %p276 = pneg %p214
        $region42: #{tpu_custom_call.1} parent=11 // pred_check_branch
          %278 = sbr.rel (%p276) target = $region44
        $region43: #{tpu_custom_call.1} parent=11 // pred_region
          _
        $region44: #{tpu_custom_call.1} parent=11 // pred_fallthru
          _
      $region12: #{tpu_custom_call.1} parent=5 // pred_fallthru
        _
      %p279 = scmp.lt.s32.totalorder %s20, 2
      // Predicated region
      $region45: #{tpu_custom_call.1} parent=5 // pred_check
        %p280 = pneg %p279
      $region46: #{tpu_custom_call.1} parent=5 // pred_check_branch
        %282 = sbr.rel (%p280) target = $region48
      $region47: #{tpu_custom_call.1} parent=5 // pred_region
        // Predicated region
        $region49: #{tpu_custom_call.1} parent=47 // pred_check
          %p283 = pneg %p40
        $region50: #{tpu_custom_call.1} parent=47 // pred_check_branch
          %285 = sbr.rel (%p283) target = $region52
        $region51: #{tpu_custom_call.1} parent=47 // pred_region
          %s286 = sand.u32 %s30, 1
          %s287 = sand.u32 %s30, 1
          %s288 = smul.addr %s287, 24
          %s289 = scalar_lea.vmem [#allocation3], %s288
          %s290 = smul.u32 3, %s20
          %s291 = smul.addr %s290, 4
          %s292 = scalar_lea.vmem %s0, %s291
          // Predicated region
          $region53: #{tpu_custom_call.1} parent=51 // pred_check
            _
          $region54: #{tpu_custom_call.1} parent=51 // pred_check_branch
            %294 = sbr.rel (0) target = $region56
          $region55: #{tpu_custom_call.1} parent=51 // pred_region
            // Predicated region
            $region57: #{tpu_custom_call.1} parent=55 // pred_check
              _
            $region58: #{tpu_custom_call.1} parent=55 // pred_check_branch
              %296 = sbr.rel (0) target = $region60
            $region59: #{tpu_custom_call.1} parent=55 // pred_region
              %s297 = scalar_lea.vmem %s292, 8
              %s298 = scalar_lea.vmem %s289, 8 [#allocation3]
              loop: start=0, step=1, limit=1
              $region61: #{tpu_custom_call.1} parent=59 // loop_pre_header
                _
              $region62: #{tpu_custom_call.1} parent=59 // loop_header
                %s300 = sphi 0, %s304
                %p301 = scmp.ge.s32.totalorder %s300, 1
                %s305 = sphi %s292, %s292
                %s306 = sphi %s289, %s289
              $region63: #{tpu_custom_call.1} parent=59 // loop_header_branch
                %303 = sbr.rel (%p301) target = $region67
              $region64: #{tpu_custom_call.1} parent=59 // loop_body
                %v307 = vld [vmem:[%s305] sm:$0xff]
                %308 = vst [vmem:[%s306] sm:$0xff] %v307
                %v309 = vld [vmem:[%s305 + $0x18] sm:$0xff]
                %310 = vst [vmem:[%s306 + $0xc] sm:$0xff] %v309
              $region65: #{tpu_custom_call.1} parent=59 // loop_footer
                %s304 = sadd.s32 1, %s300
              $region66: #{tpu_custom_call.1} parent=59 // loop_footer_branch
                %299 = sbr.rel target = $region62
              $region67: #{tpu_custom_call.1} parent=59 // loop_exit
                _
              %s312 = ssub.s32 16, 1
              loop: start=0, step=1, limit=1
              $region68: #{tpu_custom_call.1} parent=59 // loop_pre_header
                _
              $region69: #{tpu_custom_call.1} parent=59 // loop_header
                %s314 = sphi 0, %s318
                %p315 = scmp.ge.s32.totalorder %s314, 1
                %s319 = sphi %s297, %s297
                %s320 = sphi %s298, %s298
              $region70: #{tpu_custom_call.1} parent=59 // loop_header_branch
                %317 = sbr.rel (%p315) target = $region74
              $region71: #{tpu_custom_call.1} parent=59 // loop_body
                %v321 = vld [vmem:[%s319] sm:%s312]
                %322 = vst [vmem:[%s320] sm:%s312] %v321
                %v323 = vld [vmem:[%s319 + $0x18] sm:%s312]
                %324 = vst [vmem:[%s320 + $0xc] sm:%s312] %v323
              $region72: #{tpu_custom_call.1} parent=59 // loop_footer
                %s318 = sadd.s32 1, %s314
              $region73: #{tpu_custom_call.1} parent=59 // loop_footer_branch
                %313 = sbr.rel target = $region69
              $region74: #{tpu_custom_call.1} parent=59 // loop_exit
                _
            $region60: #{tpu_custom_call.1} parent=55 // pred_fallthru
              _
          $region56: #{tpu_custom_call.1} parent=51 // pred_fallthru
            _
          %325 = vnop
        $region52: #{tpu_custom_call.1} parent=47 // pred_fallthru
          _
      $region48: #{tpu_custom_call.1} parent=5 // pred_fallthru
        _
      %p326 = scmp.le.s32.totalorder 1, %s20
      %p327 = scmp.lt.s32.totalorder %s20, 3
      %p328 = pnand %p326, %p327
      %p329 = pneg %p328
      // Predicated region
      $region75: #{tpu_custom_call.1} parent=5 // pred_check
        _
      $region76: #{tpu_custom_call.1} parent=5 // pred_check_branch
        %331 = sbr.rel (%p328) target = $region78
      $region77: #{tpu_custom_call.1} parent=5 // pred_region
        %s332 = ssub.s32 %s20, 1
        %s333 = sand.u32 %s33, 1
        %s334 = sand.u32 %s33, 1
        %s335 = smul.addr %s334, 24
        %s336 = scalar_lea.vmem [#allocation3], %s335
        // Predicated region
        $region79: #{tpu_custom_call.1} parent=77 // pred_check
          %p337 = pneg %p46
        $region80: #{tpu_custom_call.1} parent=77 // pred_check_branch
          %339 = sbr.rel (%p337) target = $region82
        $region81: #{tpu_custom_call.1} parent=77 // pred_region
          _
        $region82: #{tpu_custom_call.1} parent=77 // pred_fallthru
          _
        %s340 = sand.u32 %s33, 1
        %s341 = sand.u32 %s33, 1
        %s342 = smul.addr %s341, 24
        %s343 = scalar_lea.vmem [#allocation3], %s342
        %p344 = pneg %p46
        %p345 = pneg %p43
        %p346 = pneg %p67
        %p347 = pneg %p64
        %p348 = pneg %p88
        %p349 = pneg %p85
        %p350 = pneg %p109
        %p351 = pneg %p106
        %p352 = pneg %p130
        %p353 = pneg %p127
        %p354 = pneg %p151
        %p355 = pneg %p148
        %p356 = pneg %p172
        %p357 = pneg %p169
        %p358 = pneg %p193
        %p359 = pneg %p190
        %p360 = pneg %p214
        %p361 = pneg %p211
        %p362 = pneg %p240
        %p363 = pneg %p237
        %s364 = sand.u32 %s227, 1
        %s365 = scalar_lea.sflag [#allocation5], %s364
        %s366 = sand.u32 %s227, 1
        %s367 = smul.addr %s366, 3
        %s368 = scalar_lea.vmem [#allocation4], %s367
        %s369 = smul.u32 3, %s25
        %v371 = vld [vmem:[%s336] sm:$0xff]
        %v372 = vld [vmem:[%s336 + $0x8] sm:$0xf]
        %v373 = vld [vmem:[%s336 + $0xc] sm:$0xff]
        %v374 = vld [vmem:[%s336 + $0x14] sm:$0xf]
        %v375 = vld [vmem:[%s1] sm:$0xf]
        %v376 = vld [vmem:[%s1 + $0x4] sm:$0xf]
        %v377 = vld [vmem:[%s1 + $0x8] sm:$0xf]
        %v378 = vld [vmem:[%s1 + $0xc] sm:$0xf]
        %v379 = vld [vmem:[%s2] sm:$0xff]
        %v380 = vld [vmem:[%s2 + $0x8] sm:$0xff]
        %v381 = vld [vmem:[%s2 + $0x10] sm:$0xff]
        %v382 = vld [vmem:[%s2 + $0x18] sm:$0xff]
        %384 = vset.pattern.permute.xlu0 0
        %385 = vperm.xlu0 %384, %v379
        %v386 = vpop.permute.xlu0 %385
        %389 = vset.pattern.permute.xlu0 0
        %390 = vperm.xlu0 %389, %v380
        %v391 = vpop.permute.xlu0 %390
        %394 = vset.pattern.permute.xlu0 0
        %395 = vperm.xlu0 %394, %v381
        %v396 = vpop.permute.xlu0 %395
        %399 = vset.pattern.permute.xlu0 0
        %400 = vperm.xlu0 %399, %v382
        %v401 = vpop.permute.xlu0 %400
        %v407 = vunpack.c.l.b16 %v375
        %v408 = vunpack.c.l.b16 %v376
        %v409 = vunpack.c.l.b16 %v377
        %v410 = vunpack.c.l.b16 %v378
        %v411 = vpack.c.b16 %v408, %v407
        %v412 = vpack.c.b16 %v410, %v409
        %v417 = vunpack.c.l.b16 %v371
        %v418 = vunpack.c.h.b16 %v371
        %v419 = vunpack.c.l.b16 %v372
        %v420 = vunpack.c.l.b16 %v373
        %v421 = vunpack.c.h.b16 %v373
        %v422 = vunpack.c.l.b16 %v374
        %v423 = vpack.c.b16 %v420, %v417
        %v424 = vpack.c.b16 %v421, %v418
        %v425 = vpack.c.b16 %v422, %v419
        %vm429 = vcmask 130048
        %v431 = vsel %vm429, %v411, 0
        %v434 = vsel %vm429, %v412, 0
        %436 = vmatprep.subr.bf16.mxu0 0
        %437 = vmatpush1.bf16.msra.mxu0 0
        %438 = vmatprep.subr.bf16.mxu0 0
        %439 = vmatpush1.bf16.msra.mxu0 0
        %440 = vmatprep.subr.bf16.mxu0 0
        %441 = vmatpush1.bf16.msra.mxu0 0
        %442 = vmatprep.subr.bf16.mxu0 0
        %443 = vmatpush1.bf16.msra.mxu0 0
        %444 = vmatprep.subr.bf16.mxu0 0
        %445 = vmatpush1.bf16.msra.mxu0 0
        %446 = vmatprep.subr.bf16.mxu0 0
        %447 = vmatpush1.bf16.msra.mxu0 0
        %448 = vmatprep.subr.bf16.mxu0 0
        %449 = vmatpush1.bf16.msra.mxu0 0
        %450 = vmatprep.subr.bf16.mxu0 %v424
        %451 = vmatpush1.bf16.msra.mxu0 %v423
        %452 = vmatprep.subr.bf16.mxu0 0
        %453 = vmatpush2.bf16.msra.mxu0 0
        %454 = vmatprep.subr.bf16.mxu0 0
        %455 = vmatpush2.bf16.msra.mxu0 0
        %456 = vmatprep.subr.bf16.mxu0 0
        %457 = vmatpush2.bf16.msra.mxu0 0
        %458 = vmatprep.subr.bf16.mxu0 0
        %459 = vmatpush2.bf16.msra.mxu0 0
        %460 = vmatprep.subr.bf16.mxu0 0
        %461 = vmatpush2.bf16.msra.mxu0 0
        %462 = vmatprep.subr.bf16.mxu0 0
        %463 = vmatpush2.bf16.msra.mxu0 0
        %464 = vmatprep.subr.bf16.mxu0 0
        %465 = vmatpush2.bf16.msra.mxu0 0
        %466 = vmatprep.subr.bf16.mxu0 0
        %467 = vmatpush2.bf16.msra.mxu0 0
        %468 = vmatprep.mubr.bf16.mxu0 0
        %469 = vmatmul.mubr.bf16.gmra.mxu0 %v431
        %v470 = vpop.f32.mrf.mxu0
        %v471 = vadd.f32 %v386, %v470
        %v472 = vpop.f32.mrf.mxu0
        %v473 = vadd.f32 %v386, %v472
        %v474 = vpop.f32.mrf.mxu0
        %v475 = vadd.f32 %v391, %v474
        %v476 = vpop.f32.mrf.mxu0
        %v477 = vadd.f32 %v391, %v476
        %478 = vmatprep.mubr.bf16.mxu0 0
        %479 = vmatmul.mubr.bf16.gmra.mxu0 %v434
        %v480 = vpop.f32.mrf.mxu0
        %v481 = vadd.f32 %v396, %v480
        %v482 = vpop.f32.mrf.mxu0
        %v483 = vadd.f32 %v396, %v482
        %v484 = vpop.f32.mrf.mxu0
        %v485 = vadd.f32 %v401, %v484
        %v486 = vpop.f32.mrf.mxu0
        %v487 = vadd.f32 %v401, %v486
        %488 = vdwg.mxu0
        %489 = vmatprep.subr.bf16.mxu0 0
        %490 = vmatpush1.bf16.msra.mxu0 0
        %491 = vmatprep.subr.bf16.mxu0 0
        %492 = vmatpush1.bf16.msra.mxu0 0
        %493 = vmatprep.subr.bf16.mxu0 0
        %494 = vmatpush1.bf16.msra.mxu0 0
        %495 = vmatprep.subr.bf16.mxu0 0
        %496 = vmatpush1.bf16.msra.mxu0 0
        %497 = vmatprep.subr.bf16.mxu0 0
        %498 = vmatpush1.bf16.msra.mxu0 0
        %499 = vmatprep.subr.bf16.mxu0 0
        %500 = vmatpush1.bf16.msra.mxu0 0
        %501 = vmatprep.subr.bf16.mxu0 0
        %502 = vmatpush1.bf16.msra.mxu0 0
        %503 = vmatprep.subr.bf16.mxu0 0
        %504 = vmatpush1.bf16.msra.mxu0 %v425
        %505 = vmatprep.subr.bf16.mxu0 0
        %506 = vmatpush2.bf16.msra.mxu0 0
        %507 = vmatprep.subr.bf16.mxu0 0
        %508 = vmatpush2.bf16.msra.mxu0 0
        %509 = vmatprep.subr.bf16.mxu0 0
        %510 = vmatpush2.bf16.msra.mxu0 0
        %511 = vmatprep.subr.bf16.mxu0 0
        %512 = vmatpush2.bf16.msra.mxu0 0
        %513 = vmatprep.subr.bf16.mxu0 0
        %514 = vmatpush2.bf16.msra.mxu0 0
        %515 = vmatprep.subr.bf16.mxu0 0
        %516 = vmatpush2.bf16.msra.mxu0 0
        %517 = vmatprep.subr.bf16.mxu0 0
        %518 = vmatpush2.bf16.msra.mxu0 0
        %519 = vmatprep.subr.bf16.mxu0 0
        %520 = vmatpush2.bf16.msra.mxu0 0
        %521 = vmatprep.mubr.bf16.mxu0 0
        %522 = vmatmul.mubr.bf16.gmra.mxu0 %v431
        %v523 = vpop.f32.mrf.mxu0
        %v524 = vadd.f32 %v386, %v523
        %v525 = vpop.f32.mrf.mxu0
        %v526 = vpop.f32.mrf.mxu0
        %v527 = vadd.f32 %v391, %v526
        %v528 = vpop.f32.mrf.mxu0
        %529 = vmatprep.mubr.bf16.mxu0 0
        %530 = vmatmul.mubr.bf16.gmra.mxu0 %v434
        %v531 = vpop.f32.mrf.mxu0
        %v532 = vadd.f32 %v396, %v531
        %v533 = vpop.f32.mrf.mxu0
        %v534 = vpop.f32.mrf.mxu0
        %v535 = vadd.f32 %v401, %v534
        %v536 = vpop.f32.mrf.mxu0
        %537 = vdwg.mxu0
        %v538 = vmax.f32 %v471, 0.0
        %v539 = vmax.f32 %v473, 0.0
        %v540 = vmax.f32 %v524, 0.0
        %v541 = vmax.f32 %v475, 0.0
        %v542 = vmax.f32 %v477, 0.0
        %v543 = vmax.f32 %v527, 0.0
        %v544 = vmax.f32 %v481, 0.0
        %v545 = vmax.f32 %v483, 0.0
        %v546 = vmax.f32 %v532, 0.0
        %v547 = vmax.f32 %v485, 0.0
        %v548 = vmax.f32 %v487, 0.0
        %v549 = vmax.f32 %v535, 0.0
        %v550 = vld [vmem:[%s3] sm:$0xf]
        %v551 = vld [vmem:[%s3 + $0x4] sm:$0xf]
        %v552 = vld [vmem:[%s3 + $0x8] sm:$0xf]
        %v553 = vld [vmem:[%s3 + $0xc] sm:$0xf]
        %v554 = vld [vmem:[%s4] sm:$0xff]
        %v555 = vld [vmem:[%s4 + $0x8] sm:$0xff]
        %v556 = vld [vmem:[%s4 + $0x10] sm:$0xff]
        %v557 = vld [vmem:[%s4 + $0x18] sm:$0xff]
        %v558 = vpack.c.bf16 %v541, %v538
        %v559 = vpack.c.bf16 %v542, %v539
        %v560 = vpack.c.bf16 %v543, %v540
        %v561 = vpack.c.bf16 %v547, %v544
        %v562 = vpack.c.bf16 %v548, %v545
        %v563 = vpack.c.bf16 %v549, %v546
        %565 = vset.pattern.permute.xlu0 0
        %566 = vperm.xlu0 %565, %v554
        %v567 = vpop.permute.xlu0 %566
        %570 = vset.pattern.permute.xlu0 0
        %571 = vperm.xlu0 %570, %v555
        %v572 = vpop.permute.xlu0 %571
        %575 = vset.pattern.permute.xlu0 0
        %576 = vperm.xlu0 %575, %v556
        %v577 = vpop.permute.xlu0 %576
        %580 = vset.pattern.permute.xlu0 0
        %581 = vperm.xlu0 %580, %v557
        %v582 = vpop.permute.xlu0 %581
        %v588 = vunpack.c.l.b16 %v550
        %v589 = vunpack.c.l.b16 %v551
        %v590 = vunpack.c.l.b16 %v552
        %v591 = vunpack.c.l.b16 %v553
        %v592 = vpack.c.b16 %v589, %v588
        %v593 = vpack.c.b16 %v591, %v590
        %vm594 = vcmask 261120
        %v596 = vsel %vm594, %v592, 0
        %v599 = vsel %vm594, %v593, 0
        %601 = vmatprep.subr.bf16.mxu0 0
        %602 = vmatpush1.bf16.msra.mxu0 0
        %603 = vmatprep.subr.bf16.mxu0 0
        %604 = vmatpush1.bf16.msra.mxu0 0
        %605 = vmatprep.subr.bf16.mxu0 0
        %606 = vmatpush1.bf16.msra.mxu0 0
        %607 = vmatprep.subr.bf16.mxu0 0
        %608 = vmatpush1.bf16.msra.mxu0 0
        %609 = vmatprep.subr.bf16.mxu0 0
        %610 = vmatpush1.bf16.msra.mxu0 0
        %611 = vmatprep.subr.bf16.mxu0 0
        %612 = vmatpush1.bf16.msra.mxu0 0
        %613 = vmatprep.subr.bf16.mxu0 %v562
        %614 = vmatpush1.bf16.msra.mxu0 %v561
        %615 = vmatprep.subr.bf16.mxu0 %v559
        %616 = vmatpush1.bf16.msra.mxu0 %v558
        %617 = vmatprep.subr.bf16.mxu0 0
        %618 = vmatpush2.bf16.msra.mxu0 0
        %619 = vmatprep.subr.bf16.mxu0 0
        %620 = vmatpush2.bf16.msra.mxu0 0
        %621 = vmatprep.subr.bf16.mxu0 0
        %622 = vmatpush2.bf16.msra.mxu0 0
        %623 = vmatprep.subr.bf16.mxu0 0
        %624 = vmatpush2.bf16.msra.mxu0 0
        %625 = vmatprep.subr.bf16.mxu0 0
        %626 = vmatpush2.bf16.msra.mxu0 0
        %627 = vmatprep.subr.bf16.mxu0 0
        %628 = vmatpush2.bf16.msra.mxu0 0
        %629 = vmatprep.subr.bf16.mxu0 0
        %630 = vmatpush2.bf16.msra.mxu0 0
        %631 = vmatprep.subr.bf16.mxu0 0
        %632 = vmatpush2.bf16.msra.mxu0 0
        %633 = vmatprep.mubr.bf16.mxu0 0
        %634 = vmatmul.mubr.bf16.gmra.mxu0 %v596
        %v635 = vpop.f32.mrf.mxu0
        %v636 = vadd.f32 %v567, %v635
        %v637 = vpop.f32.mrf.mxu0
        %v638 = vadd.f32 %v567, %v637
        %v639 = vpop.f32.mrf.mxu0
        %v640 = vadd.f32 %v572, %v639
        %v641 = vpop.f32.mrf.mxu0
        %v642 = vadd.f32 %v572, %v641
        %643 = vmatprep.mubr.bf16.mxu0 0
        %644 = vmatmul.mubr.bf16.gmra.mxu0 %v599
        %v645 = vpop.f32.mrf.mxu0
        %v646 = vadd.f32 %v577, %v645
        %v647 = vpop.f32.mrf.mxu0
        %v648 = vadd.f32 %v577, %v647
        %v649 = vpop.f32.mrf.mxu0
        %v650 = vadd.f32 %v582, %v649
        %v651 = vpop.f32.mrf.mxu0
        %v652 = vadd.f32 %v582, %v651
        %653 = vdwg.mxu0
        %654 = vmatprep.subr.bf16.mxu0 0
        %655 = vmatpush1.bf16.msra.mxu0 0
        %656 = vmatprep.subr.bf16.mxu0 0
        %657 = vmatpush1.bf16.msra.mxu0 0
        %658 = vmatprep.subr.bf16.mxu0 0
        %659 = vmatpush1.bf16.msra.mxu0 0
        %660 = vmatprep.subr.bf16.mxu0 0
        %661 = vmatpush1.bf16.msra.mxu0 0
        %662 = vmatprep.subr.bf16.mxu0 0
        %663 = vmatpush1.bf16.msra.mxu0 0
        %664 = vmatprep.subr.bf16.mxu0 0
        %665 = vmatpush1.bf16.msra.mxu0 0
        %666 = vmatprep.subr.bf16.mxu0 0
        %667 = vmatpush1.bf16.msra.mxu0 %v563
        %668 = vmatprep.subr.bf16.mxu0 0
        %669 = vmatpush1.bf16.msra.mxu0 %v560
        %670 = vmatprep.subr.bf16.mxu0 0
        %671 = vmatpush2.bf16.msra.mxu0 0
        %672 = vmatprep.subr.bf16.mxu0 0
        %673 = vmatpush2.bf16.msra.mxu0 0
        %674 = vmatprep.subr.bf16.mxu0 0
        %675 = vmatpush2.bf16.msra.mxu0 0
        %676 = vmatprep.subr.bf16.mxu0 0
        %677 = vmatpush2.bf16.msra.mxu0 0
        %678 = vmatprep.subr.bf16.mxu0 0
        %679 = vmatpush2.bf16.msra.mxu0 0
        %680 = vmatprep.subr.bf16.mxu0 0
        %681 = vmatpush2.bf16.msra.mxu0 0
        %682 = vmatprep.subr.bf16.mxu0 0
        %683 = vmatpush2.bf16.msra.mxu0 0
        %684 = vmatprep.subr.bf16.mxu0 0
        %685 = vmatpush2.bf16.msra.mxu0 0
        %686 = vmatprep.mubr.bf16.mxu0 0
        %687 = vmatmul.mubr.bf16.gmra.mxu0 %v596
        %v688 = vpop.f32.mrf.mxu0
        %v689 = vadd.f32 %v567, %v688
        %v690 = vpop.f32.mrf.mxu0
        %v691 = vpop.f32.mrf.mxu0
        %v692 = vadd.f32 %v572, %v691
        %v693 = vpop.f32.mrf.mxu0
        %694 = vmatprep.mubr.bf16.mxu0 0
        %695 = vmatmul.mubr.bf16.gmra.mxu0 %v599
        %v696 = vpop.f32.mrf.mxu0
        %v697 = vadd.f32 %v577, %v696
        %v698 = vpop.f32.mrf.mxu0
        %v699 = vpop.f32.mrf.mxu0
        %v700 = vadd.f32 %v582, %v699
        %v701 = vpop.f32.mrf.mxu0
        %702 = vdwg.mxu0
        %v703 = vmax.f32 %v636, 0.0
        %v704 = vmax.f32 %v638, 0.0
        %v705 = vmax.f32 %v689, 0.0
        %v706 = vmax.f32 %v640, 0.0
        %v707 = vmax.f32 %v642, 0.0
        %v708 = vmax.f32 %v692, 0.0
        %v709 = vmax.f32 %v646, 0.0
        %v710 = vmax.f32 %v648, 0.0
        %v711 = vmax.f32 %v697, 0.0
        %v712 = vmax.f32 %v650, 0.0
        %v713 = vmax.f32 %v652, 0.0
        %v714 = vmax.f32 %v700, 0.0
        %v715 = vpack.c.bf16 %v706, %v703
        %v716 = vpack.c.bf16 %v707, %v704
        %v717 = vpack.c.bf16 %v708, %v705
        %v718 = vpack.c.bf16 %v712, %v709
        %v719 = vpack.c.bf16 %v713, %v710
        %v720 = vpack.c.bf16 %v714, %v711
        %721 = vmatprep.subr.bf16.mxu0 0
        %722 = vmatpush1.bf16.msra.mxu0 0
        %723 = vmatprep.subr.bf16.mxu0 0
        %724 = vmatpush1.bf16.msra.mxu0 0
        %725 = vmatprep.subr.bf16.mxu0 0
        %726 = vmatpush1.bf16.msra.mxu0 0
        %727 = vmatprep.subr.bf16.mxu0 0
        %728 = vmatpush1.bf16.msra.mxu0 0
        %729 = vmatprep.subr.bf16.mxu0 0
        %730 = vmatpush1.bf16.msra.mxu0 0
        %731 = vmatprep.subr.bf16.mxu0 0
        %732 = vmatpush1.bf16.msra.mxu0 0
        %733 = vmatprep.subr.bf16.mxu0 %v719
        %734 = vmatpush1.bf16.msra.mxu0 %v718
        %735 = vmatprep.subr.bf16.mxu0 %v716
        %736 = vmatpush1.bf16.msra.mxu0 %v715
        %737 = vmatprep.subr.bf16.mxu0 0
        %738 = vmatpush2.bf16.msra.mxu0 0
        %739 = vmatprep.subr.bf16.mxu0 0
        %740 = vmatpush2.bf16.msra.mxu0 0
        %741 = vmatprep.subr.bf16.mxu0 0
        %742 = vmatpush2.bf16.msra.mxu0 0
        %743 = vmatprep.subr.bf16.mxu0 0
        %744 = vmatpush2.bf16.msra.mxu0 0
        %745 = vmatprep.subr.bf16.mxu0 0
        %746 = vmatpush2.bf16.msra.mxu0 0
        %747 = vmatprep.subr.bf16.mxu0 0
        %748 = vmatpush2.bf16.msra.mxu0 0
        %749 = vmatprep.subr.bf16.mxu0 0
        %750 = vmatpush2.bf16.msra.mxu0 0
        %751 = vmatprep.subr.bf16.mxu0 0
        %752 = vmatpush2.bf16.msra.mxu0 0
        %753 = vmatprep.mubr.bf16.mxu0 0
        %754 = vmatmul.mubr.bf16.gmra.mxu0 %v596
        %v755 = vpop.f32.mrf.mxu0
        %v756 = vadd.f32 %v567, %v755
        %v757 = vpop.f32.mrf.mxu0
        %v758 = vadd.f32 %v567, %v757
        %v759 = vpop.f32.mrf.mxu0
        %v760 = vadd.f32 %v572, %v759
        %v761 = vpop.f32.mrf.mxu0
        %v762 = vadd.f32 %v572, %v761
        %763 = vmatprep.mubr.bf16.mxu0 0
        %764 = vmatmul.mubr.bf16.gmra.mxu0 %v599
        %v765 = vpop.f32.mrf.mxu0
        %v766 = vadd.f32 %v577, %v765
        %v767 = vpop.f32.mrf.mxu0
        %v768 = vadd.f32 %v577, %v767
        %v769 = vpop.f32.mrf.mxu0
        %v770 = vadd.f32 %v582, %v769
        %v771 = vpop.f32.mrf.mxu0
        %v772 = vadd.f32 %v582, %v771
        %773 = vdwg.mxu0
        %774 = vmatprep.subr.bf16.mxu0 0
        %775 = vmatpush1.bf16.msra.mxu0 0
        %776 = vmatprep.subr.bf16.mxu0 0
        %777 = vmatpush1.bf16.msra.mxu0 0
        %778 = vmatprep.subr.bf16.mxu0 0
        %779 = vmatpush1.bf16.msra.mxu0 0
        %780 = vmatprep.subr.bf16.mxu0 0
        %781 = vmatpush1.bf16.msra.mxu0 0
        %782 = vmatprep.subr.bf16.mxu0 0
        %783 = vmatpush1.bf16.msra.mxu0 0
        %784 = vmatprep.subr.bf16.mxu0 0
        %785 = vmatpush1.bf16.msra.mxu0 0
        %786 = vmatprep.subr.bf16.mxu0 0
        %787 = vmatpush1.bf16.msra.mxu0 %v720
        %788 = vmatprep.subr.bf16.mxu0 0
        %789 = vmatpush1.bf16.msra.mxu0 %v717
        %790 = vmatprep.subr.bf16.mxu0 0
        %791 = vmatpush2.bf16.msra.mxu0 0
        %792 = vmatprep.subr.bf16.mxu0 0
        %793 = vmatpush2.bf16.msra.mxu0 0
        %794 = vmatprep.subr.bf16.mxu0 0
        %795 = vmatpush2.bf16.msra.mxu0 0
        %796 = vmatprep.subr.bf16.mxu0 0
        %797 = vmatpush2.bf16.msra.mxu0 0
        %798 = vmatprep.subr.bf16.mxu0 0
        %799 = vmatpush2.bf16.msra.mxu0 0
        %800 = vmatprep.subr.bf16.mxu0 0
        %801 = vmatpush2.bf16.msra.mxu0 0
        %802 = vmatprep.subr.bf16.mxu0 0
        %803 = vmatpush2.bf16.msra.mxu0 0
        %804 = vmatprep.subr.bf16.mxu0 0
        %805 = vmatpush2.bf16.msra.mxu0 0
        %806 = vmatprep.mubr.bf16.mxu0 0
        %807 = vmatmul.mubr.bf16.gmra.mxu0 %v596
        %v808 = vpop.f32.mrf.mxu0
        %v809 = vadd.f32 %v567, %v808
        %v810 = vpop.f32.mrf.mxu0
        %v811 = vpop.f32.mrf.mxu0
        %v812 = vadd.f32 %v572, %v811
        %v813 = vpop.f32.mrf.mxu0
        %814 = vmatprep.mubr.bf16.mxu0 0
        %815 = vmatmul.mubr.bf16.gmra.mxu0 %v599
        %v816 = vpop.f32.mrf.mxu0
        %v817 = vadd.f32 %v577, %v816
        %v818 = vpop.f32.mrf.mxu0
        %v819 = vpop.f32.mrf.mxu0
        %v820 = vadd.f32 %v582, %v819
        %v821 = vpop.f32.mrf.mxu0
        %822 = vdwg.mxu0
        %v823 = vmax.f32 %v756, 0.0
        %v824 = vmax.f32 %v758, 0.0
        %v825 = vmax.f32 %v809, 0.0
        %v826 = vmax.f32 %v760, 0.0
        %v827 = vmax.f32 %v762, 0.0
        %v828 = vmax.f32 %v812, 0.0
        %v829 = vmax.f32 %v766, 0.0
        %v830 = vmax.f32 %v768, 0.0
        %v831 = vmax.f32 %v817, 0.0
        %v832 = vmax.f32 %v770, 0.0
        %v833 = vmax.f32 %v772, 0.0
        %v834 = vmax.f32 %v820, 0.0
        %v835 = vld [vmem:[%s5] sm:$0xf]
        %v836 = vld [vmem:[%s5 + $0x4] sm:$0xf]
        %v837 = vld [vmem:[%s5 + $0x8] sm:$0xf]
        %v838 = vld [vmem:[%s5 + $0xc] sm:$0xf]
        %v839 = vld [vmem:[%s5 + $0x10] sm:$0xf]
        %v840 = vld [vmem:[%s5 + $0x14] sm:$0xf]
        %v841 = vld [vmem:[%s5 + $0x18] sm:$0xf]
        %v842 = vld [vmem:[%s5 + $0x1c] sm:$0xf]
        %v843 = vpack.c.bf16 %v826, %v823
        %v844 = vpack.c.bf16 %v827, %v824
        %v845 = vpack.c.bf16 %v828, %v825
        %v846 = vpack.c.bf16 %v832, %v829
        %v847 = vpack.c.bf16 %v833, %v830
        %v848 = vpack.c.bf16 %v834, %v831
        %v849 = vld [vmem:[%s6] sm:$0xff]
        %v850 = vld [vmem:[%s6 + $0x8] sm:$0xff]
        %v851 = vld [vmem:[%s6 + $0x10] sm:$0xff]
        %v852 = vld [vmem:[%s6 + $0x18] sm:$0xff]
        %v853 = vld [vmem:[%s6 + $0x20] sm:$0xff]
        %v854 = vld [vmem:[%s6 + $0x28] sm:$0xff]
        %v855 = vld [vmem:[%s6 + $0x30] sm:$0xff]
        %v856 = vld [vmem:[%s6 + $0x38] sm:$0xff]
        %858 = vset.pattern.permute.xlu0 0
        %859 = vperm.xlu0 %858, %v849
        %v860 = vpop.permute.xlu0 %859
        %863 = vset.pattern.permute.xlu0 0
        %864 = vperm.xlu0 %863, %v850
        %v865 = vpop.permute.xlu0 %864
        %868 = vset.pattern.permute.xlu0 0
        %869 = vperm.xlu0 %868, %v851
        %v870 = vpop.permute.xlu0 %869
        %873 = vset.pattern.permute.xlu0 0
        %874 = vperm.xlu0 %873, %v852
        %v875 = vpop.permute.xlu0 %874
        %878 = vset.pattern.permute.xlu0 0
        %879 = vperm.xlu0 %878, %v853
        %v880 = vpop.permute.xlu0 %879
        %883 = vset.pattern.permute.xlu0 0
        %884 = vperm.xlu0 %883, %v854
        %v885 = vpop.permute.xlu0 %884
        %888 = vset.pattern.permute.xlu0 0
        %889 = vperm.xlu0 %888, %v855
        %v890 = vpop.permute.xlu0 %889
        %893 = vset.pattern.permute.xlu0 0
        %894 = vperm.xlu0 %893, %v856
        %v895 = vpop.permute.xlu0 %894
        %v905 = vunpack.c.l.b16 %v835
        %v906 = vunpack.c.l.b16 %v836
        %v907 = vunpack.c.l.b16 %v837
        %v908 = vunpack.c.l.b16 %v838
        %v909 = vunpack.c.l.b16 %v839
        %v910 = vunpack.c.l.b16 %v840
        %v911 = vunpack.c.l.b16 %v841
        %v912 = vunpack.c.l.b16 %v842
        %v913 = vpack.c.b16 %v906, %v905
        %v914 = vpack.c.b16 %v908, %v907
        %v915 = vpack.c.b16 %v910, %v909
        %v916 = vpack.c.b16 %v912, %v911
        %v918 = vsel %vm594, %v913, 0
        %v921 = vsel %vm594, %v914, 0
        %v924 = vsel %vm594, %v915, 0
        %v927 = vsel %vm594, %v916, 0
        %929 = vmatprep.subr.bf16.mxu0 0
        %930 = vmatpush1.bf16.msra.mxu0 0
        %931 = vmatprep.subr.bf16.mxu0 0
        %932 = vmatpush1.bf16.msra.mxu0 0
        %933 = vmatprep.subr.bf16.mxu0 0
        %934 = vmatpush1.bf16.msra.mxu0 0
        %935 = vmatprep.subr.bf16.mxu0 0
        %936 = vmatpush1.bf16.msra.mxu0 0
        %937 = vmatprep.subr.bf16.mxu0 0
        %938 = vmatpush1.bf16.msra.mxu0 0
        %939 = vmatprep.subr.bf16.mxu0 0
        %940 = vmatpush1.bf16.msra.mxu0 0
        %941 = vmatprep.subr.bf16.mxu0 %v847
        %942 = vmatpush1.bf16.msra.mxu0 %v846
        %943 = vmatprep.subr.bf16.mxu0 %v844
        %944 = vmatpush1.bf16.msra.mxu0 %v843
        %945 = vmatprep.subr.bf16.mxu0 0
        %946 = vmatpush2.bf16.msra.mxu0 0
        %947 = vmatprep.subr.bf16.mxu0 0
        %948 = vmatpush2.bf16.msra.mxu0 0
        %949 = vmatprep.subr.bf16.mxu0 0
        %950 = vmatpush2.bf16.msra.mxu0 0
        %951 = vmatprep.subr.bf16.mxu0 0
        %952 = vmatpush2.bf16.msra.mxu0 0
        %953 = vmatprep.subr.bf16.mxu0 0
        %954 = vmatpush2.bf16.msra.mxu0 0
        %955 = vmatprep.subr.bf16.mxu0 0
        %956 = vmatpush2.bf16.msra.mxu0 0
        %957 = vmatprep.subr.bf16.mxu0 0
        %958 = vmatpush2.bf16.msra.mxu0 0
        %959 = vmatprep.subr.bf16.mxu0 0
        %960 = vmatpush2.bf16.msra.mxu0 0
        %961 = vmatprep.mubr.bf16.mxu0 0
        %962 = vmatmul.mubr.bf16.gmra.mxu0 %v918
        %v963 = vpop.f32.mrf.mxu0
        %v964 = vadd.f32 %v860, %v963
        %v965 = vpop.f32.mrf.mxu0
        %v966 = vadd.f32 %v860, %v965
        %v967 = vpop.f32.mrf.mxu0
        %v968 = vadd.f32 %v865, %v967
        %v969 = vpop.f32.mrf.mxu0
        %v970 = vadd.f32 %v865, %v969
        %971 = vmatprep.mubr.bf16.mxu0 0
        %972 = vmatmul.mubr.bf16.gmra.mxu0 %v921
        %v973 = vpop.f32.mrf.mxu0
        %v974 = vadd.f32 %v870, %v973
        %v975 = vpop.f32.mrf.mxu0
        %v976 = vadd.f32 %v870, %v975
        %v977 = vpop.f32.mrf.mxu0
        %v978 = vadd.f32 %v875, %v977
        %v979 = vpop.f32.mrf.mxu0
        %v980 = vadd.f32 %v875, %v979
        %981 = vmatprep.mubr.bf16.mxu0 0
        %982 = vmatmul.mubr.bf16.gmra.mxu0 %v924
        %v983 = vpop.f32.mrf.mxu0
        %v984 = vadd.f32 %v880, %v983
        %v985 = vpop.f32.mrf.mxu0
        %v986 = vadd.f32 %v880, %v985
        %v987 = vpop.f32.mrf.mxu0
        %v988 = vadd.f32 %v885, %v987
        %v989 = vpop.f32.mrf.mxu0
        %v990 = vadd.f32 %v885, %v989
        %991 = vmatprep.mubr.bf16.mxu0 0
        %992 = vmatmul.mubr.bf16.gmra.mxu0 %v927
        %v993 = vpop.f32.mrf.mxu0
        %v994 = vadd.f32 %v890, %v993
        %v995 = vpop.f32.mrf.mxu0
        %v996 = vadd.f32 %v890, %v995
        %v997 = vpop.f32.mrf.mxu0
        %v998 = vadd.f32 %v895, %v997
        %v999 = vpop.f32.mrf.mxu0
        %v1000 = vadd.f32 %v895, %v999
        %1001 = vdwg.mxu0
        %1002 = vmatprep.subr.bf16.mxu0 0
        %1003 = vmatpush1.bf16.msra.mxu0 0
        %1004 = vmatprep.subr.bf16.mxu0 0
        %1005 = vmatpush1.bf16.msra.mxu0 0
        %1006 = vmatprep.subr.bf16.mxu0 0
        %1007 = vmatpush1.bf16.msra.mxu0 0
        %1008 = vmatprep.subr.bf16.mxu0 0
        %1009 = vmatpush1.bf16.msra.mxu0 0
        %1010 = vmatprep.subr.bf16.mxu0 0
        %1011 = vmatpush1.bf16.msra.mxu0 0
        %1012 = vmatprep.subr.bf16.mxu0 0
        %1013 = vmatpush1.bf16.msra.mxu0 0
        %1014 = vmatprep.subr.bf16.mxu0 0
        %1015 = vmatpush1.bf16.msra.mxu0 %v848
        %1016 = vmatprep.subr.bf16.mxu0 0
        %1017 = vmatpush1.bf16.msra.mxu0 %v845
        %1018 = vmatprep.subr.bf16.mxu0 0
        %1019 = vmatpush2.bf16.msra.mxu0 0
        %1020 = vmatprep.subr.bf16.mxu0 0
        %1021 = vmatpush2.bf16.msra.mxu0 0
        %1022 = vmatprep.subr.bf16.mxu0 0
        %1023 = vmatpush2.bf16.msra.mxu0 0
        %1024 = vmatprep.subr.bf16.mxu0 0
        %1025 = vmatpush2.bf16.msra.mxu0 0
        %1026 = vmatprep.subr.bf16.mxu0 0
        %1027 = vmatpush2.bf16.msra.mxu0 0
        %1028 = vmatprep.subr.bf16.mxu0 0
        %1029 = vmatpush2.bf16.msra.mxu0 0
        %1030 = vmatprep.subr.bf16.mxu0 0
        %1031 = vmatpush2.bf16.msra.mxu0 0
        %1032 = vmatprep.subr.bf16.mxu0 0
        %1033 = vmatpush2.bf16.msra.mxu0 0
        %1034 = vmatprep.mubr.bf16.mxu0 0
        %1035 = vmatmul.mubr.bf16.gmra.mxu0 %v918
        %v1036 = vpop.f32.mrf.mxu0
        %v1037 = vadd.f32 %v860, %v1036
        %v1038 = vpop.f32.mrf.mxu0
        %v1039 = vpop.f32.mrf.mxu0
        %v1040 = vadd.f32 %v865, %v1039
        %v1041 = vpop.f32.mrf.mxu0
        %1042 = vmatprep.mubr.bf16.mxu0 0
        %1043 = vmatmul.mubr.bf16.gmra.mxu0 %v921
        %v1044 = vpop.f32.mrf.mxu0
        %v1045 = vadd.f32 %v870, %v1044
        %v1046 = vpop.f32.mrf.mxu0
        %v1047 = vpop.f32.mrf.mxu0
        %v1048 = vadd.f32 %v875, %v1047
        %v1049 = vpop.f32.mrf.mxu0
        %1050 = vmatprep.mubr.bf16.mxu0 0
        %1051 = vmatmul.mubr.bf16.gmra.mxu0 %v924
        %v1052 = vpop.f32.mrf.mxu0
        %v1053 = vadd.f32 %v880, %v1052
        %v1054 = vpop.f32.mrf.mxu0
        %v1055 = vpop.f32.mrf.mxu0
        %v1056 = vadd.f32 %v885, %v1055
        %v1057 = vpop.f32.mrf.mxu0
        %1058 = vmatprep.mubr.bf16.mxu0 0
        %1059 = vmatmul.mubr.bf16.gmra.mxu0 %v927
        %v1060 = vpop.f32.mrf.mxu0
        %v1061 = vadd.f32 %v890, %v1060
        %v1062 = vpop.f32.mrf.mxu0
        %v1063 = vpop.f32.mrf.mxu0
        %v1064 = vadd.f32 %v895, %v1063
        %v1065 = vpop.f32.mrf.mxu0
        %1066 = vdwg.mxu0
        %v1067 = vmax.f32 %v964, 0.0
        %v1068 = vmax.f32 %v966, 0.0
        %v1069 = vmax.f32 %v1037, 0.0
        %v1070 = vmax.f32 %v968, 0.0
        %v1071 = vmax.f32 %v970, 0.0
        %v1072 = vmax.f32 %v1040, 0.0
        %v1073 = vmax.f32 %v974, 0.0
        %v1074 = vmax.f32 %v976, 0.0
        %v1075 = vmax.f32 %v1045, 0.0
        %v1076 = vmax.f32 %v978, 0.0
        %v1077 = vmax.f32 %v980, 0.0
        %v1078 = vmax.f32 %v1048, 0.0
        %v1079 = vmax.f32 %v984, 0.0
        %v1080 = vmax.f32 %v986, 0.0
        %v1081 = vmax.f32 %v1053, 0.0
        %v1082 = vmax.f32 %v988, 0.0
        %v1083 = vmax.f32 %v990, 0.0
        %v1084 = vmax.f32 %v1056, 0.0
        %v1085 = vmax.f32 %v994, 0.0
        %v1086 = vmax.f32 %v996, 0.0
        %v1087 = vmax.f32 %v1061, 0.0
        %v1088 = vmax.f32 %v998, 0.0
        %v1089 = vmax.f32 %v1000, 0.0
        %v1090 = vmax.f32 %v1064, 0.0
        %v1091 = vld [vmem:[%s7] sm:$0xff]
        %v1092 = vld [vmem:[%s7 + $0x8] sm:$0xff]
        %v1093 = vld [vmem:[%s7 + $0x10] sm:$0xff]
        %v1094 = vld [vmem:[%s7 + $0x18] sm:$0xff]
        %v1095 = vld [vmem:[%s7 + $0x20] sm:$0xff]
        %v1096 = vld [vmem:[%s7 + $0x28] sm:$0xff]
        %v1097 = vld [vmem:[%s7 + $0x30] sm:$0xff]
        %v1098 = vld [vmem:[%s7 + $0x38] sm:$0xff]
        %1100 = vset.pattern.permute.xlu0 0
        %1101 = vperm.xlu0 %1100, %v1091
        %v1102 = vpop.permute.xlu0 %1101
        %1105 = vset.pattern.permute.xlu0 0
        %1106 = vperm.xlu0 %1105, %v1092
        %v1107 = vpop.permute.xlu0 %1106
        %1110 = vset.pattern.permute.xlu0 0
        %1111 = vperm.xlu0 %1110, %v1093
        %v1112 = vpop.permute.xlu0 %1111
        %1115 = vset.pattern.permute.xlu0 0
        %1116 = vperm.xlu0 %1115, %v1094
        %v1117 = vpop.permute.xlu0 %1116
        %1120 = vset.pattern.permute.xlu0 0
        %1121 = vperm.xlu0 %1120, %v1095
        %v1122 = vpop.permute.xlu0 %1121
        %1125 = vset.pattern.permute.xlu0 0
        %1126 = vperm.xlu0 %1125, %v1096
        %v1127 = vpop.permute.xlu0 %1126
        %1130 = vset.pattern.permute.xlu0 0
        %1131 = vperm.xlu0 %1130, %v1097
        %v1132 = vpop.permute.xlu0 %1131
        %1135 = vset.pattern.permute.xlu0 0
        %1136 = vperm.xlu0 %1135, %v1098
        %v1137 = vpop.permute.xlu0 %1136
        %v1139 = vmul.f32 %v1067, %v1102
        %v1140 = vmul.f32 %v1068, %v1102
        %v1141 = vmul.f32 %v1069, %v1102
        %v1142 = vmul.f32 %v1070, %v1107
        %v1143 = vmul.f32 %v1071, %v1107
        %v1144 = vmul.f32 %v1072, %v1107
        %v1145 = vmul.f32 %v1073, %v1112
        %v1146 = vmul.f32 %v1074, %v1112
        %v1147 = vmul.f32 %v1075, %v1112
        %v1148 = vmul.f32 %v1076, %v1117
        %v1149 = vmul.f32 %v1077, %v1117
        %v1150 = vmul.f32 %v1078, %v1117
        %v1151 = vmul.f32 %v1079, %v1122
        %v1152 = vmul.f32 %v1080, %v1122
        %v1153 = vmul.f32 %v1081, %v1122
        %v1154 = vmul.f32 %v1082, %v1127
        %v1155 = vmul.f32 %v1083, %v1127
        %v1156 = vmul.f32 %v1084, %v1127
        %v1157 = vmul.f32 %v1085, %v1132
        %v1158 = vmul.f32 %v1086, %v1132
        %v1159 = vmul.f32 %v1087, %v1132
        %v1160 = vmul.f32 %v1088, %v1137
        %v1161 = vmul.f32 %v1089, %v1137
        %v1162 = vmul.f32 %v1090, %v1137
        %v1163 = vadd.f32 %v1139, %v1142
        %v1164 = vadd.f32 %v1163, %v1145
        %v1165 = vadd.f32 %v1164, %v1148
        %v1166 = vadd.f32 %v1165, %v1151
        %v1167 = vadd.f32 %v1166, %v1154
        %v1168 = vadd.f32 %v1167, %v1157
        %v1169 = vadd.f32 %v1168, %v1160
        %v1170 = vrot.slane %v1169, 4
        %v1171 = vadd.f32 %v1169, %v1170
        %v1172 = vrot.slane %v1171, 2
        %v1173 = vadd.f32 %v1171, %v1172
        %v1174 = vrot.slane %v1173, 1
        %v1175 = vadd.f32 %v1173, %v1174
        %v1176 = vadd.f32 %v1140, %v1143
        %v1177 = vadd.f32 %v1176, %v1146
        %v1178 = vadd.f32 %v1177, %v1149
        %v1179 = vadd.f32 %v1178, %v1152
        %v1180 = vadd.f32 %v1179, %v1155
        %v1181 = vadd.f32 %v1180, %v1158
        %v1182 = vadd.f32 %v1181, %v1161
        %v1183 = vrot.slane %v1182, 4
        %v1184 = vadd.f32 %v1182, %v1183
        %v1185 = vrot.slane %v1184, 2
        %v1186 = vadd.f32 %v1184, %v1185
        %v1187 = vrot.slane %v1186, 1
        %v1188 = vadd.f32 %v1186, %v1187
        %v1189 = vadd.f32 %v1141, %v1144
        %v1190 = vadd.f32 %v1189, %v1147
        %v1191 = vadd.f32 %v1190, %v1150
        %v1192 = vadd.f32 %v1191, %v1153
        %v1193 = vadd.f32 %v1192, %v1156
        %v1194 = vadd.f32 %v1193, %v1159
        %v1195 = vadd.f32 %v1194, %v1162
        %v1196 = vrot.slane %v1195, 4
        %v1197 = vadd.f32 %v1195, %v1196
        %v1198 = vrot.slane %v1197, 2
        %v1199 = vadd.f32 %v1197, %v1198
        %v1200 = vrot.slane %v1199, 1
        %v1201 = vadd.f32 %v1199, %v1200
        %v1202 = vld [vmem:[#allocation2] sm:$0x1]
        %1204 = vset.pattern.permute.xlu0 0
        %1205 = vperm.xlu0 %1204, %v1202
        %v1206 = vpop.permute.xlu0 %1205
        %v1208 = vlaneseq
        %v1209 = vshrl.u32 %v1208, 7
        %v1210 = vsub.s32 0, %v1209
        %v1211 = vrot.slane %v1206, %v1210
        %v1212 = vadd.f32 %v1175, %v1211
        %v1213 = vadd.f32 %v1188, %v1211
        %v1214 = vadd.f32 %v1201, %v1211
        %v1218 = vcombine.low %v1212, %v1213
        %v1220 = vunpack.c.l.s4 1966171168
        %v1221 = vunpack.c.0.s8 %v1220
        %v1222 = vlaneseq
        %v1223 = vshrl.u32 %v1222, 7
        %v1224 = vsub.s32 %v1221, %v1223
        %v1225 = vrot.slane %v1218, %v1224
        %v1227 = vunpack.c.l.s4 1966171168
        %v1228 = vunpack.c.0.s8 %v1227
        %v1229 = vlaneseq
        %v1230 = vshrl.u32 %v1229, 7
        %v1231 = vsub.s32 %v1228, %v1230
        %v1232 = vrot.slane %v1214, %v1231
        %v1233 = vcombine.low %v1225, %v1232
        %v1235 = vunpack.c.l.s4 1966171168
        %v1236 = vunpack.c.0.s8 %v1235
        %v1237 = vlaneseq
        %v1238 = vshrl.u32 %v1237, 7
        %v1239 = vsub.s32 %v1236, %v1238
        %v1240 = vrot.slane %v1233, %v1239
        %v1242 = vlaneseq
        %vm1243 = vcmp.ge.s32.totalorder %v1242, 0
        %vm1244 = vcmp.lt.s32.totalorder %v1242, 384
        %vm1245 = vmand %vm1243, %vm1244
        %1246 = vst.msk [vmem:[%s368] sm:$0x7] %vm1245, %v1240
        %s1247 = sand.u32 %s227, 1
        %s1248 = scalar_lea.sflag [#allocation5], %s1247
        %s1249 = sand.u32 %s227, 1
        %s1250 = smul.addr %s1249, 3
        %s1251 = scalar_lea.vmem [#allocation4], %s1250
        // Predicated region
        $region83: #{tpu_custom_call.1} parent=77 // pred_check
          %p1252 = pneg %p237
        $region84: #{tpu_custom_call.1} parent=77 // pred_check_branch
          %1254 = sbr.rel (%p1252) target = $region86
        $region85: #{tpu_custom_call.1} parent=77 // pred_region
          %s1256 = ssub.s32 48, 48
          %1257 = vsyncadd %s1248, %s1256
          %s1258 = smul.addr %s25, 3
          %s1259 = smul.addr %s1258, 16
          %s1260 = scalar_lea.hbm %s9, %s1259
          %s1262 = sshll.u32 %s1251, 4
          %s1263 = int_to_ptr.vmem [resolvable:$true] %s1262
          %1265 = dma.vmem_to_hbm [thread:$0]  %s1263, 48, %s1260, %s1248
        $region86: #{tpu_custom_call.1} parent=77 // pred_fallthru
          _
      $region78: #{tpu_custom_call.1} parent=5 // pred_fallthru
        _
      %p1266 = scmp.le.s32.totalorder 2, %s20
      // Predicated region
      $region87: #{tpu_custom_call.1} parent=5 // pred_check
        %p1267 = pneg %p1266
      $region88: #{tpu_custom_call.1} parent=5 // pred_check_branch
        %1269 = sbr.rel (%p1267) target = $region90
      $region89: #{tpu_custom_call.1} parent=5 // pred_region
        %s1270 = ssub.s32 %s20, 2
        // Predicated region
        $region91: #{tpu_custom_call.1} parent=89 // pred_check
          %p1271 = pneg %p243
        $region92: #{tpu_custom_call.1} parent=89 // pred_check_branch
          %1273 = sbr.rel (%p1271) target = $region94
        $region93: #{tpu_custom_call.1} parent=89 // pred_region
          %s1274 = sand.u32 %s228, 1
          %s1275 = scalar_lea.sflag [#allocation5], %s1274
          %s1276 = sand.u32 %s228, 1
          %s1277 = smul.addr %s1276, 3
          %s1278 = scalar_lea.vmem [#allocation4], %s1277
          %1279 = dma.done %s1275, 48
        $region94: #{tpu_custom_call.1} parent=89 // pred_fallthru
          _
      $region90: #{tpu_custom_call.1} parent=5 // pred_fallthru
        _
    $region6: #{tpu_custom_call.1} parent=1 // loop_footer
      %s24 = sadd.s32 1, %s20
    $region7: #{tpu_custom_call.1} parent=1 // loop_footer_branch
      %19 = sbr.rel target = $region3
    $region8: #{tpu_custom_call.1} parent=1 // loop_exit
      _
    %1280 = vsyncpa [#allocation5], 1
    %s1281 = scalar_lea.sflag [#allocation5], 1
    %1282 = vsyncpa %s1281, 1

</llo_original>
